<compile_context>
chip_gen: v6e
topology: v6e:2x2x1
jax: 0.10.0
libtpu: 0.0.40
codegen_flags: <defaults>
</compile_context>

<pallas_src>
import jax
import jax.numpy as jnp
from jax.experimental import pallas as pl
from jax.experimental.pallas import tpu as pltpu

_LANES = 128
# Bias for padded logit columns; exp underflows to exactly 0.  Only wrong if a
# real logit were itself < -1e30, which cannot happen for finite f32 activations.
_NEG_INF = -1.0e30


def _vmem_sizes():
    """Per-chip VMEM budgeting: ~96 MiB limit on v5e/v6e (128 MiB VMEM), ~48 MiB on v7x (64 MiB)."""
    try:
        cap = int(pltpu.get_tpu_info().vmem_capacity_bytes)
    except Exception:
        cap = 64 * 1024 * 1024  # conservative fallback (v7x-sized)
    limit = min(cap * 3 // 4, 96 * 1024 * 1024)
    budget = limit * 3 // 4     # working-set target inside the scoped limit
    return budget, limit


_VMEM_BUDGET, _VMEM_LIMIT = _vmem_sizes()


def _round_up(x, m):
    return (x + m - 1) // m * m


def _sublane_pack(itemsize):
    # Rows per packed sublane group: 8 for f32, 16 for bf16, 32 for int8.
    return max(8, 32 // int(itemsize))


def _pick_tile_n(n, h, o_k, itemsize, pack):
    """Largest batch tile whose VMEM footprint fits the budget, nicely aligned."""
    fixed = (h * o_k + o_k) * 4                   # resident W + bias (single-buffered, ~f32)
    per_row = (2 * h * itemsize                   # x tile (double-buffered)
               + 2 * o_k * itemsize               # out tile (double-buffered)
               + 3 * o_k * 4)                     # f32 logits/shifted/exp temporaries
    tn = (_VMEM_BUDGET - fixed) // max(per_row, 1)
    tn = max(tn, pack)
    tn = min(tn, 1024, _round_up(n, pack))        # >512-1024 rows adds no extra bandwidth
    for mult in (256, 128):                       # MXU-friendly heights when large enough
        if tn >= mult:
            return tn // mult * mult
    return max(pack, tn // pack * pack)


def _make_kernel(apply_softmax, matmul_dtype):
    def kernel(x_ref, w_ref, b_ref, o_ref):
        xv = x_ref[...]
        wv = w_ref[...]
        if matmul_dtype is not None:              # optional bf16 MXU path (off by default)
            xv = xv.astype(matmul_dtype)
            wv = wv.astype(matmul_dtype)
        # Linear: logits = x @ W + b (MXU matmul, f32 accumulation; bias is f32).
        out = jnp.dot(xv, wv, preferred_element_type=jnp.float32) + b_ref[...]
        if apply_softmax:
            # Numerically-stable log_softmax along the last (lane) axis.
            m = jnp.max(out, axis=-1, keepdims=True)
            shifted = out - m
            lse = jnp.log(jnp.sum(jnp.exp(shifted), axis=-1, keepdims=True))
            out = shifted - lse
        o_ref[...] = out.astype(o_ref.dtype)
    return kernel


def prepare_params(w, b):
    """One-time parameter prep (hoisted out of the forward pass).

    w: [H, O] (transpose of PyTorch's [O, H] weight), b: [O].
    Lane-dense padding of the output axis is applied only when it pays
    (O >= 128 and not a multiple of 128).  Padded columns get zero weights and
    a -1e30 bias so they carry no softmax mass.  Bias is pre-cast to f32 and
    reshaped to a (1, O_k) row.
    Returns (w_kernel, bias_kernel, n_out).
    """
    _, o = w.shape
    if o >= _LANES and o % _LANES:
        o_k = _round_up(o, _LANES)
        w = jnp.pad(w, ((0, 0), (0, o_k - o)))
        b = jnp.pad(b, (0, o_k - o), constant_values=_NEG_INF)
    return w, b.reshape(1, -1).astype(jnp.float32), o


def _build_call(kernel, n, h, o_k, tn, out_dtype, single_buffer_resident):
    resident_kw = {}
    if single_buffer_resident:
        # W/bias never change across the grid -> no point double-buffering them.
        resident_kw = dict(pipeline_mode=pl.Buffered(buffer_count=1))
    return pl.pallas_call(
        kernel,
        out_shape=jax.ShapeDtypeStruct((n, o_k), out_dtype),
        grid=(pl.cdiv(n, tn),),
        in_specs=[
            pl.BlockSpec((tn, h), lambda i: (i, 0)),                   # streamed batch tile
            pl.BlockSpec((h, o_k), lambda i: (0, 0), **resident_kw),   # resident weight
            pl.BlockSpec((1, o_k), lambda i: (0, 0), **resident_kw),   # resident bias
        ],
        out_specs=pl.BlockSpec((tn, o_k), lambda i: (i, 0)),
        compiler_params=pltpu.CompilerParams(
            dimension_semantics=("parallel",),
            vmem_limit_bytes=_VMEM_LIMIT,
        ),
    )


def classifier_forward(x, w_k, b_k, n_out, tile_n=None, matmul_dtype=None):
    """x: [..., H]; (w_k, b_k, n_out) from prepare_params(w, b).

    Matches PyTorch: log_softmax(linear(x).squeeze(), dim=-1).
    """
    orig_lead = x.shape[:-1]
    h = x.shape[-1]
    o_k = w_k.shape[1]
    out_dtype = x.dtype

    x2 = x.reshape(-1, h)
    n = x2.shape[0]

    pack = _sublane_pack(x2.dtype.itemsize)
    if tile_n is None:
        tn = _pick_tile_n(n, h, o_k, x2.dtype.itemsize, pack)
    else:
        tn = max(pack, int(tile_n) // pack * pack)

    # TODO(synk): add an O-tiled online-log-softmax path (grid over O marked
    # "arbitrary", running max/sum scratch, finalize under pl.when) for heads
    # where H*O_k*4 exceeds the VMEM budget (large-vocab heads, tightest on v7x).

    # n_out == 1: PyTorch squeezes BEFORE log_softmax, so the softmax axis is
    # the (former) batch axis; emit raw logits and softmax in the wrapper.
    apply_softmax = n_out > 1
    kernel = _make_kernel(apply_softmax, matmul_dtype)

    try:
        out = _build_call(kernel, n, h, o_k, tn, out_dtype, True)(x2, w_k, b_k)
    except Exception:
        # Backend rejected single-buffered resident specs: fall back to defaults.
        out = _build_call(kernel, n, h, o_k, tn, out_dtype, False)(x2, w_k, b_k)

    if o_k != n_out:
        out = out[:, :n_out]            # drop lane-dense padding columns (only when O >= 128)
    out = jnp.squeeze(out.reshape(orig_lead + (n_out,)))   # PyTorch .squeeze() glue
    if not apply_softmax:
        out = jax.nn.log_softmax(out.astype(jnp.float32), axis=-1).astype(out_dtype)
    return out


def init_classifier_params(key, n_hid, n_out):
    """Deterministic init mimicking nn.Linear's default U(-1/sqrt(n_hid), 1/sqrt(n_hid))."""
    kw, kb = jax.random.split(key)
    bound = 1.0 / jnp.sqrt(jnp.float32(n_hid))
    # PyTorch weight is [n_out, n_hid]; we store its transpose [n_hid, n_out].
    w = jax.random.uniform(kw, (n_hid, n_out), jnp.float32, -bound, bound)
    b = jax.random.uniform(kb, (n_out,), jnp.float32, -bound, bound)
    return w, b


if __name__ == "__main__":
    key = jax.random.PRNGKey(0)
    kx, kp, kx2, kp1 = jax.random.split(key, 4)

    n_hid, n_out, batch = 32, 16, 8
    x = jax.random.normal(kx, (batch, n_hid), jnp.float32)
    w, b = init_classifier_params(kp, n_hid, n_out)
    w_k, b_k, o = prepare_params(w, b)     # hoisted one-time param prep

    out = jax.block_until_ready(classifier_forward(x, w_k, b_k, o))
    ref = jax.nn.log_softmax(x @ w + b, axis=-1)
    assert out.shape == (batch, n_out)
    assert jnp.allclose(out, ref, atol=1e-5, rtol=1e-5)

    # Multi-tile pipelined path with a partial last block (no wrapper pad/slice).
    x_big = jax.random.normal(kx2, (200, n_hid), jnp.float32)
    out_big = jax.block_until_ready(classifier_forward(x_big, w_k, b_k, o, tile_n=64))
    ref_big = jax.nn.log_softmax(x_big @ w + b, axis=-1)
    assert out_big.shape == (200, n_out)
    assert jnp.allclose(out_big, ref_big, atol=1e-5, rtol=1e-5)

    # n_out == 1 edge case: PyTorch squeezes before log_softmax, so the softmax
    # runs over the (former) batch axis.
    w1, b1 = init_classifier_params(kp1, n_hid, 1)
    w1_k, b1_k, o1 = prepare_params(w1, b1)
    out1 = jax.block_until_ready(classifier_forward(x, w1_k, b1_k, o1))
    ref1 = jax.nn.log_softmax((x @ w1 + b1).squeeze(), axis=-1)
    assert out1.shape == (batch,)
    assert jnp.allclose(out1, ref1, atol=1e-5, rtol=1e-5)

    print("KERNEL_OK")
</pallas_src>

<mosaic_0001>
module attributes {stable_mosaic.version = 11 : i64} {
  func.func @kernel(%arg0: i32, %arg1: memref<8x32xf32, #tpu.memory_space<vmem>>, %arg2: memref<32x16xf32, #tpu.memory_space<vmem>>, %arg3: memref<1x16xf32, #tpu.memory_space<vmem>>, %arg4: memref<8x16xf32, #tpu.memory_space<vmem>>) attributes {dimension_semantics = [#tpu.dimension_semantics<parallel>], iteration_bounds = array<i64: 1>, scalar_prefetch = 0 : i64, scratch_operands = 0 : i64, tpu.core_type = #tpu.core_type<tc>, window_params = [{transform_indices = @transform_0, window_bounds = array<i64: 8, 32>}, {pipeline_mode = #tpu.pipeline_mode<synchronous>, transform_indices = @transform_1, window_bounds = array<i64: 32, 16>}, {pipeline_mode = #tpu.pipeline_mode<synchronous>, transform_indices = @transform_2, window_bounds = array<i64: 1, 16>}, {transform_indices = @transform_3, window_bounds = array<i64: 8, 16>}]} {
    %c0 = arith.constant 0 : index
    %c0_0 = arith.constant 0 : index
    %0 = vector.load %arg1[%c0, %c0_0] : memref<8x32xf32, #tpu.memory_space<vmem>>, vector<8x32xf32>
    %c0_1 = arith.constant 0 : index
    %c0_2 = arith.constant 0 : index
    %1 = vector.load %arg2[%c0_1, %c0_2] : memref<32x16xf32, #tpu.memory_space<vmem>>, vector<32x16xf32>
    %cst = arith.constant dense<0.000000e+00> : vector<8x16xf32>
    %2 = tpu.matmul %0, %1, %cst {dimension_numbers = #tpu.dot_dimension_numbers<[1], [0], [0], [1], [0, 0, 1, 1], [], []>} : vector<8x32xf32>, vector<32x16xf32>, vector<8x16xf32> -> vector<8x16xf32>
    %c0_3 = arith.constant 0 : index
    %c0_4 = arith.constant 0 : index
    %3 = vector.load %arg3[%c0_3, %c0_4] : memref<1x16xf32, #tpu.memory_space<vmem>>, vector<1x16xf32>
    %4 = vector.broadcast %3 : vector<1x16xf32> to vector<8x16xf32>
    %5 = arith.addf %2, %4 : vector<8x16xf32>
    %cst_5 = arith.constant dense<0xFF800000> : vector<8xf32>
    %6 = vector.multi_reduction <maximumf>, %5, %cst_5 [1] : vector<8x16xf32> to vector<8xf32>
    %7 = vector.shape_cast %6 : vector<8xf32> to vector<8x1xf32>
    %8 = vector.broadcast %7 : vector<8x1xf32> to vector<8x16xf32>
    %9 = arith.subf %5, %8 : vector<8x16xf32>
    %10 = math.exp %9 : vector<8x16xf32>
    %cst_6 = arith.constant dense<0.000000e+00> : vector<8xf32>
    %11 = vector.multi_reduction <add>, %10, %cst_6 [1] : vector<8x16xf32> to vector<8xf32>
    %12 = vector.shape_cast %11 : vector<8xf32> to vector<8x1xf32>
    %13 = math.log %12 : vector<8x1xf32>
    %14 = vector.broadcast %13 : vector<8x1xf32> to vector<8x16xf32>
    %15 = arith.subf %9, %14 : vector<8x16xf32>
    %c0_7 = arith.constant 0 : index
    %c0_8 = arith.constant 0 : index
    %16 = vector.load %arg4[%c0_7, %c0_8] : memref<8x16xf32, #tpu.memory_space<vmem>>, vector<8x16xf32>
    tpu.vector_store %arg4[%c0_7, %c0_8], %15 {strides = array<i32>} : memref<8x16xf32, #tpu.memory_space<vmem>>, vector<8x16xf32>,
    return
  }
  func.func @transform_0(%arg0: i32) -> (i32, i32) {
    %c0_i32 = arith.constant 0 : i32
    %c0_i32_0 = arith.constant 0 : i32
    return %arg0, %c0_i32 : i32, i32
  }
  func.func @transform_1(%arg0: i32) -> (i32, i32) {
    %c0_i32 = arith.constant 0 : i32
    %c0_i32_0 = arith.constant 0 : i32
    %c0_i32_1 = arith.constant 0 : i32
    return %c0_i32, %c0_i32_0 : i32, i32
  }
  func.func @transform_2(%arg0: i32) -> (i32, i32) {
    %c0_i32 = arith.constant 0 : i32
    %c0_i32_0 = arith.constant 0 : i32
    %c0_i32_1 = arith.constant 0 : i32
    return %c0_i32, %c0_i32_0 : i32, i32
  }
  func.func @transform_3(%arg0: i32) -> (i32, i32) {
    %c0_i32 = arith.constant 0 : i32
    %c0_i32_0 = arith.constant 0 : i32
    return %arg0, %c0_i32 : i32, i32
  }
}

module attributes {stable_mosaic.version = 11 : i64} {
  func.func @kernel(%arg0: i32, %arg1: memref<8x32xf32, #tpu.memory_space<vmem>>, %arg2: memref<32x16xf32, #tpu.memory_space<vmem>>, %arg3: memref<1x16xf32, #tpu.memory_space<vmem>>, %arg4: memref<8x16xf32, #tpu.memory_space<vmem>>) attributes {dimension_semantics = [#tpu.dimension_semantics<parallel>], iteration_bounds = array<i64: 1>, scalar_prefetch = 0 : i64, scratch_operands = 0 : i64, tpu.core_type = #tpu.core_type<tc>, window_params = [{transform_indices = @transform_0, window_bounds = array<i64: 8, 32>}, {pipeline_mode = #tpu.pipeline_mode<synchronous>, transform_indices = @transform_1, window_bounds = array<i64: 32, 16>}, {pipeline_mode = #tpu.pipeline_mode<synchronous>, transform_indices = @transform_2, window_bounds = array<i64: 1, 16>}, {transform_indices = @transform_3, window_bounds = array<i64: 8, 16>}]} {
    %c0 = arith.constant 0 : index
    %c0_0 = arith.constant 0 : index
    %0 = vector.load %arg1[%c0, %c0_0] : memref<8x32xf32, #tpu.memory_space<vmem>>, vector<8x32xf32>
    %c0_1 = arith.constant 0 : index
    %c0_2 = arith.constant 0 : index
    %1 = vector.load %arg2[%c0_1, %c0_2] : memref<32x16xf32, #tpu.memory_space<vmem>>, vector<32x16xf32>
    %cst = arith.constant dense<0.000000e+00> : vector<8x16xf32>
    %2 = tpu.matmul %0, %1, %cst {dimension_numbers = #tpu.dot_dimension_numbers<[1], [0], [0], [1], [0, 0, 1, 1], [], []>} : vector<8x32xf32>, vector<32x16xf32>, vector<8x16xf32> -> vector<8x16xf32>
    %c0_3 = arith.constant 0 : index
    %c0_4 = arith.constant 0 : index
    %3 = vector.load %arg3[%c0_3, %c0_4] : memref<1x16xf32, #tpu.memory_space<vmem>>, vector<1x16xf32>
    %4 = vector.broadcast %3 : vector<1x16xf32> to vector<8x16xf32>
    %5 = arith.addf %2, %4 : vector<8x16xf32>
    %cst_5 = arith.constant dense<0xFF800000> : vector<8xf32>
    %6 = vector.multi_reduction <maximumf>, %5, %cst_5 [1] : vector<8x16xf32> to vector<8xf32>
    %7 = vector.shape_cast %6 : vector<8xf32> to vector<8x1xf32>
    %8 = vector.broadcast %7 : vector<8x1xf32> to vector<8x16xf32>
    %9 = arith.subf %5, %8 : vector<8x16xf32>
    %10 = math.exp %9 : vector<8x16xf32>
    %cst_6 = arith.constant dense<0.000000e+00> : vector<8xf32>
    %11 = vector.multi_reduction <add>, %10, %cst_6 [1] : vector<8x16xf32> to vector<8xf32>
    %12 = vector.shape_cast %11 : vector<8xf32> to vector<8x1xf32>
    %13 = math.log %12 : vector<8x1xf32>
    %14 = vector.broadcast %13 : vector<8x1xf32> to vector<8x16xf32>
    %15 = arith.subf %9, %14 : vector<8x16xf32>
    %c0_7 = arith.constant 0 : index
    %c0_8 = arith.constant 0 : index
    %16 = vector.load %arg4[%c0_7, %c0_8] : memref<8x16xf32, #tpu.memory_space<vmem>>, vector<8x16xf32>
    tpu.vector_store %arg4[%c0_7, %c0_8], %15 {strides = array<i32>} : memref<8x16xf32, #tpu.memory_space<vmem>>, vector<8x16xf32>,
    return
  }
  func.func @transform_0(%arg0: i32) -> (i32, i32) {
    %c0_i32 = arith.constant 0 : i32
    %c0_i32_0 = arith.constant 0 : i32
    return %arg0, %c0_i32 : i32, i32
  }
  func.func @transform_1(%arg0: i32) -> (i32, i32) {
    %c0_i32 = arith.constant 0 : i32
    %c0_i32_0 = arith.constant 0 : i32
    %c0_i32_1 = arith.constant 0 : i32
    return %c0_i32, %c0_i32_0 : i32, i32
  }
  func.func @transform_2(%arg0: i32) -> (i32, i32) {
    %c0_i32 = arith.constant 0 : i32
    %c0_i32_0 = arith.constant 0 : i32
    %c0_i32_1 = arith.constant 0 : i32
    return %c0_i32, %c0_i32_0 : i32, i32
  }
  func.func @transform_3(%arg0: i32) -> (i32, i32) {
    %c0_i32 = arith.constant 0 : i32
    %c0_i32_0 = arith.constant 0 : i32
    return %arg0, %c0_i32 : i32, i32
  }
}

</mosaic_0001>

<llo_original>
// kernel: tpu_custom_call.1
$region0: #{tpu_custom_call.1}
  #allocation0 [shape = 'u32[]', space=smem, size = 0x4, offset = 0x4, fixed_abs, tag = 'smem constant byte address 0x4 - core index']
  #allocation1 [shape = 'u32[144,128]{1,0:T(1,128)}', space=vmem, size = 0x12000, scoped, tag = 'internal scratch']
  %s0 = inlined_call_operand.vmem [shape: f32[8,32], index: 0, kind: input, shape index: {}]
  %s1 = inlined_call_operand.vmem [shape: f32[32,16], index: 1, kind: input, shape index: {}]
  %s2 = inlined_call_operand.vmem [shape: f32[1,16], index: 2, kind: input, shape index: {}]
  %s3 = inlined_call_operand.hbm [shape: f32[8,16], index: 3, kind: output, shape index: {}]
  %s4 = sld [smem:[#allocation0]]
  $region22: #{tpu_custom_call.1} parent=0
    _
  %s6 = ssub.s32 1, %s4
  %s7 = scalar_select 0, %s6, %s4
  $region1: #{tpu_custom_call.1} parent=0
    #allocation2 [shape = 'u8[4096]{0}', space=vmem, size = 0x1000, scoped, tag = 'output window, operand 0, single buffered']
    #allocation3 [shape = 's32[1]{0}', space=sflag, size = 0x4, scoped, tag = 'scoped memory for tpu_custom_call.1']
    %8 = vsyncpa [#allocation3], 0
    // Predicated region
    $region2: #{tpu_custom_call.1} parent=1 // pred_check
      _
    $region3: #{tpu_custom_call.1} parent=1 // pred_check_branch
      %10 = sbr.rel (0) target = $region5
    $region4: #{tpu_custom_call.1} parent=1 // pred_region
      _
    $region5: #{tpu_custom_call.1} parent=1 // pred_fallthru
      _
    // Predicated region
    $region6: #{tpu_custom_call.1} parent=1 // pred_check
      _
    $region7: #{tpu_custom_call.1} parent=1 // pred_check_branch
      %12 = sbr.rel (0) target = $region9
    $region8: #{tpu_custom_call.1} parent=1 // pred_region
      _
    $region9: #{tpu_custom_call.1} parent=1 // pred_fallthru
      _
    // Predicated region
    $region10: #{tpu_custom_call.1} parent=1 // pred_check
      _
    $region11: #{tpu_custom_call.1} parent=1 // pred_check_branch
      %14 = sbr.rel (0) target = $region13
    $region12: #{tpu_custom_call.1} parent=1 // pred_region
      _
    $region13: #{tpu_custom_call.1} parent=1 // pred_fallthru
      _
    %v15 = vld [vmem:[%s0] sm:$0xff]
    %v16 = vld [vmem:[%s1] sm:$0xff]
    %v17 = vld [vmem:[%s1 + $0x8] sm:$0xff]
    %v18 = vld [vmem:[%s1 + $0x10] sm:$0xff]
    %v19 = vld [vmem:[%s1 + $0x18] sm:$0xff]
    %v20 = vld [vmem:[%s2] sm:$0x1]
    %v22 = vlaneseq
    %v23 = vshrl.u32 %v22, 7
    %v24 = vsub.s32 0, %v23
    %v25 = vrot.slane %v20, %v24
    %vm27 = vcmask 261120
    %v29 = vsel %vm27, %v15, 0
    %31 = vmatprep.subr.mxu0 0.0
    %32 = vmatpush1.msra.mxu0 0.0
    %33 = vmatprep.subr.mxu0 0.0
    %34 = vmatpush1.msra.mxu0 0.0
    %35 = vmatprep.subr.mxu0 0.0
    %36 = vmatpush1.msra.mxu0 0.0
    %37 = vmatprep.subr.mxu0 0.0
    %38 = vmatpush1.msra.mxu0 0.0
    %39 = vmatprep.subr.mxu0 0.0
    %40 = vmatpush1.msra.mxu0 0.0
    %41 = vmatprep.subr.mxu0 0.0
    %42 = vmatpush1.msra.mxu0 0.0
    %43 = vmatprep.subr.mxu0 0.0
    %44 = vmatpush1.msra.mxu0 0.0
    %45 = vmatprep.subr.mxu0 0.0
    %46 = vmatpush1.msra.mxu0 0.0
    %47 = vmatprep.subr.mxu0 0.0
    %48 = vmatpush1.msra.mxu0 0.0
    %49 = vmatprep.subr.mxu0 0.0
    %50 = vmatpush1.msra.mxu0 0.0
    %51 = vmatprep.subr.mxu0 0.0
    %52 = vmatpush1.msra.mxu0 0.0
    %53 = vmatprep.subr.mxu0 0.0
    %54 = vmatpush1.msra.mxu0 0.0
    %55 = vmatprep.subr.mxu0 0.0
    %56 = vmatpush1.msra.mxu0 %v19
    %57 = vmatprep.subr.mxu0 0.0
    %58 = vmatpush1.msra.mxu0 %v18
    %59 = vmatprep.subr.mxu0 0.0
    %60 = vmatpush1.msra.mxu0 %v17
    %61 = vmatprep.subr.mxu0 0.0
    %62 = vmatpush1.msra.mxu0 %v16
    %63 = vmatprep.subr.mxu0 0.0
    %64 = vmatpush2.msra.mxu0 0.0
    %65 = vmatprep.subr.mxu0 0.0
    %66 = vmatpush2.msra.mxu0 0.0
    %67 = vmatprep.subr.mxu0 0.0
    %68 = vmatpush2.msra.mxu0 0.0
    %69 = vmatprep.subr.mxu0 0.0
    %70 = vmatpush2.msra.mxu0 0.0
    %71 = vmatprep.subr.mxu0 0.0
    %72 = vmatpush2.msra.mxu0 0.0
    %73 = vmatprep.subr.mxu0 0.0
    %74 = vmatpush2.msra.mxu0 0.0
    %75 = vmatprep.subr.mxu0 0.0
    %76 = vmatpush2.msra.mxu0 0.0
    %77 = vmatprep.subr.mxu0 0.0
    %78 = vmatpush2.msra.mxu0 0.0
    %79 = vmatprep.subr.mxu0 0.0
    %80 = vmatpush2.msra.mxu0 0.0
    %81 = vmatprep.subr.mxu0 0.0
    %82 = vmatpush2.msra.mxu0 0.0
    %83 = vmatprep.subr.mxu0 0.0
    %84 = vmatpush2.msra.mxu0 0.0
    %85 = vmatprep.subr.mxu0 0.0
    %86 = vmatpush2.msra.mxu0 0.0
    %87 = vmatprep.subr.mxu0 0.0
    %88 = vmatpush2.msra.mxu0 0.0
    %89 = vmatprep.subr.mxu0 0.0
    %90 = vmatpush2.msra.mxu0 0.0
    %91 = vmatprep.subr.mxu0 0.0
    %92 = vmatpush2.msra.mxu0 0.0
    %93 = vmatprep.subr.mxu0 0.0
    %94 = vmatpush2.msra.mxu0 0.0
    %95 = vmatprep.mubr.f32.mxu0 0.0
    %96 = vmatmul.mubr.f32.gmra.mxu0 %v29
    %v97 = vpop.f32.mrf.mxu0
    %v98 = vadd.f32 %v25, %v97
    %v99 = vpop.f32.mrf.mxu0
    %100 = vdwg.mxu0
    %vm101 = vcmask 130048
    %v102 = vsel %vm101, %v98, -inf
    %103 = vmax.xlane.f32.xlu0 %v102
    %v104 = vpop.xlane.xlu0 %103
    %v105 = vsub.f32 %v98, %v104
    %v106 = vmul.f32 %v105, 1.442695
    %v107 = vpow.pop %v106
    %v108 = vsel %vm101, %v107, 0.0
    %109 = vadd.xlane.f32.xlu0 %v108
    %v110 = vpop.xlane.xlu0 %109
    %v111 = vlog2.pop %v110
    %v112 = vmul.f32 %v111, 0.6931472
    %v113 = vsub.f32 %v105, %v112
    %114 = vst.msk [vmem:[#allocation2] sm:$0xff] %vm101, %v113
    // Predicated region
    $region14: #{tpu_custom_call.1} parent=1 // pred_check
      _
    $region15: #{tpu_custom_call.1} parent=1 // pred_check_branch
      %116 = sbr.rel (0) target = $region17
    $region16: #{tpu_custom_call.1} parent=1 // pred_region
      %s118 = ssub.s32 128, 128
      %119 = vsyncadd [#allocation3], %s118
      %s121 = sshll.u32 [#allocation2], 4
      %s122 = int_to_ptr.vmem [resolvable:$true] %s121
      %124 = dma.vmem_to_hbm [thread:$0]  %s122, 128, %s3, [#allocation3]
    $region17: #{tpu_custom_call.1} parent=1 // pred_fallthru
      _
    // Predicated region
    $region18: #{tpu_custom_call.1} parent=1 // pred_check
      _
    $region19: #{tpu_custom_call.1} parent=1 // pred_check_branch
      %126 = sbr.rel (0) target = $region21
    $region20: #{tpu_custom_call.1} parent=1 // pred_region
      %127 = dma.done [#allocation3], 128
    $region21: #{tpu_custom_call.1} parent=1 // pred_fallthru
      _
    %128 = vsyncpa [#allocation3], 1

// kernel: tpu_custom_call.1
$region0: #{tpu_custom_call.1}
  #allocation0 [shape = 'u32[]', space=smem, size = 0x4, offset = 0x4, fixed_abs, tag = 'smem constant byte address 0x4 - core index']
  #allocation1 [shape = 'u32[144,128]{1,0:T(1,128)}', space=vmem, size = 0x12000, scoped, tag = 'internal scratch']
  %s0 = inlined_call_operand.vmem [shape: f32[8,32], index: 0, kind: input, shape index: {}]
  %s1 = inlined_call_operand.vmem [shape: f32[32,16], index: 1, kind: input, shape index: {}]
  %s2 = inlined_call_operand.vmem [shape: f32[1,16], index: 2, kind: input, shape index: {}]
  %s3 = inlined_call_operand.hbm [shape: f32[8,16], index: 3, kind: output, shape index: {}]
  %s4 = sld [smem:[#allocation0]]
  $region22: #{tpu_custom_call.1} parent=0
    _
  %s6 = ssub.s32 1, %s4
  %s7 = scalar_select 0, %s6, %s4
  $region1: #{tpu_custom_call.1} parent=0
    #allocation2 [shape = 'u8[4096]{0}', space=vmem, size = 0x1000, scoped, tag = 'output window, operand 0, single buffered']
    #allocation3 [shape = 's32[1]{0}', space=sflag, size = 0x4, scoped, tag = 'scoped memory for tpu_custom_call.1']
    %8 = vsyncpa [#allocation3], 0
    // Predicated region
    $region2: #{tpu_custom_call.1} parent=1 // pred_check
      _
    $region3: #{tpu_custom_call.1} parent=1 // pred_check_branch
      %10 = sbr.rel (0) target = $region5
    $region4: #{tpu_custom_call.1} parent=1 // pred_region
      _
    $region5: #{tpu_custom_call.1} parent=1 // pred_fallthru
      _
    // Predicated region
    $region6: #{tpu_custom_call.1} parent=1 // pred_check
      _
    $region7: #{tpu_custom_call.1} parent=1 // pred_check_branch
      %12 = sbr.rel (0) target = $region9
    $region8: #{tpu_custom_call.1} parent=1 // pred_region
      _
    $region9: #{tpu_custom_call.1} parent=1 // pred_fallthru
      _
    // Predicated region
    $region10: #{tpu_custom_call.1} parent=1 // pred_check
      _
    $region11: #{tpu_custom_call.1} parent=1 // pred_check_branch
      %14 = sbr.rel (0) target = $region13
    $region12: #{tpu_custom_call.1} parent=1 // pred_region
      _
    $region13: #{tpu_custom_call.1} parent=1 // pred_fallthru
      _
    %v15 = vld [vmem:[%s0] sm:$0xff]
    %v16 = vld [vmem:[%s1] sm:$0xff]
    %v17 = vld [vmem:[%s1 + $0x8] sm:$0xff]
    %v18 = vld [vmem:[%s1 + $0x10] sm:$0xff]
    %v19 = vld [vmem:[%s1 + $0x18] sm:$0xff]
    %v20 = vld [vmem:[%s2] sm:$0x1]
    %v22 = vlaneseq
    %v23 = vshrl.u32 %v22, 7
    %v24 = vsub.s32 0, %v23
    %v25 = vrot.slane %v20, %v24
    %vm27 = vcmask 261120
    %v29 = vsel %vm27, %v15, 0
    %31 = vmatprep.subr.mxu0 0.0
    %32 = vmatpush1.msra.mxu0 0.0
    %33 = vmatprep.subr.mxu0 0.0
    %34 = vmatpush1.msra.mxu0 0.0
    %35 = vmatprep.subr.mxu0 0.0
    %36 = vmatpush1.msra.mxu0 0.0
    %37 = vmatprep.subr.mxu0 0.0
    %38 = vmatpush1.msra.mxu0 0.0
    %39 = vmatprep.subr.mxu0 0.0
    %40 = vmatpush1.msra.mxu0 0.0
    %41 = vmatprep.subr.mxu0 0.0
    %42 = vmatpush1.msra.mxu0 0.0
    %43 = vmatprep.subr.mxu0 0.0
    %44 = vmatpush1.msra.mxu0 0.0
    %45 = vmatprep.subr.mxu0 0.0
    %46 = vmatpush1.msra.mxu0 0.0
    %47 = vmatprep.subr.mxu0 0.0
    %48 = vmatpush1.msra.mxu0 0.0
    %49 = vmatprep.subr.mxu0 0.0
    %50 = vmatpush1.msra.mxu0 0.0
    %51 = vmatprep.subr.mxu0 0.0
    %52 = vmatpush1.msra.mxu0 0.0
    %53 = vmatprep.subr.mxu0 0.0
    %54 = vmatpush1.msra.mxu0 0.0
    %55 = vmatprep.subr.mxu0 0.0
    %56 = vmatpush1.msra.mxu0 %v19
    %57 = vmatprep.subr.mxu0 0.0
    %58 = vmatpush1.msra.mxu0 %v18
    %59 = vmatprep.subr.mxu0 0.0
    %60 = vmatpush1.msra.mxu0 %v17
    %61 = vmatprep.subr.mxu0 0.0
    %62 = vmatpush1.msra.mxu0 %v16
    %63 = vmatprep.subr.mxu0 0.0
    %64 = vmatpush2.msra.mxu0 0.0
    %65 = vmatprep.subr.mxu0 0.0
    %66 = vmatpush2.msra.mxu0 0.0
    %67 = vmatprep.subr.mxu0 0.0
    %68 = vmatpush2.msra.mxu0 0.0
    %69 = vmatprep.subr.mxu0 0.0
    %70 = vmatpush2.msra.mxu0 0.0
    %71 = vmatprep.subr.mxu0 0.0
    %72 = vmatpush2.msra.mxu0 0.0
    %73 = vmatprep.subr.mxu0 0.0
    %74 = vmatpush2.msra.mxu0 0.0
    %75 = vmatprep.subr.mxu0 0.0
    %76 = vmatpush2.msra.mxu0 0.0
    %77 = vmatprep.subr.mxu0 0.0
    %78 = vmatpush2.msra.mxu0 0.0
    %79 = vmatprep.subr.mxu0 0.0
    %80 = vmatpush2.msra.mxu0 0.0
    %81 = vmatprep.subr.mxu0 0.0
    %82 = vmatpush2.msra.mxu0 0.0
    %83 = vmatprep.subr.mxu0 0.0
    %84 = vmatpush2.msra.mxu0 0.0
    %85 = vmatprep.subr.mxu0 0.0
    %86 = vmatpush2.msra.mxu0 0.0
    %87 = vmatprep.subr.mxu0 0.0
    %88 = vmatpush2.msra.mxu0 0.0
    %89 = vmatprep.subr.mxu0 0.0
    %90 = vmatpush2.msra.mxu0 0.0
    %91 = vmatprep.subr.mxu0 0.0
    %92 = vmatpush2.msra.mxu0 0.0
    %93 = vmatprep.subr.mxu0 0.0
    %94 = vmatpush2.msra.mxu0 0.0
    %95 = vmatprep.mubr.f32.mxu0 0.0
    %96 = vmatmul.mubr.f32.gmra.mxu0 %v29
    %v97 = vpop.f32.mrf.mxu0
    %v98 = vadd.f32 %v25, %v97
    %v99 = vpop.f32.mrf.mxu0
    %100 = vdwg.mxu0
    %vm101 = vcmask 130048
    %v102 = vsel %vm101, %v98, -inf
    %103 = vmax.xlane.f32.xlu0 %v102
    %v104 = vpop.xlane.xlu0 %103
    %v105 = vsub.f32 %v98, %v104
    %v106 = vmul.f32 %v105, 1.442695
    %v107 = vpow.pop %v106
    %v108 = vsel %vm101, %v107, 0.0
    %109 = vadd.xlane.f32.xlu0 %v108
    %v110 = vpop.xlane.xlu0 %109
    %v111 = vlog2.pop %v110
    %v112 = vmul.f32 %v111, 0.6931472
    %v113 = vsub.f32 %v105, %v112
    %114 = vst.msk [vmem:[#allocation2] sm:$0xff] %vm101, %v113
    // Predicated region
    $region14: #{tpu_custom_call.1} parent=1 // pred_check
      _
    $region15: #{tpu_custom_call.1} parent=1 // pred_check_branch
      %116 = sbr.rel (0) target = $region17
    $region16: #{tpu_custom_call.1} parent=1 // pred_region
      %s118 = ssub.s32 128, 128
      %119 = vsyncadd [#allocation3], %s118
      %s121 = sshll.u32 [#allocation2], 4
      %s122 = int_to_ptr.vmem [resolvable:$true] %s121
      %124 = dma.vmem_to_hbm [thread:$0]  %s122, 128, %s3, [#allocation3]
    $region17: #{tpu_custom_call.1} parent=1 // pred_fallthru
      _
    // Predicated region
    $region18: #{tpu_custom_call.1} parent=1 // pred_check
      _
    $region19: #{tpu_custom_call.1} parent=1 // pred_check_branch
      %126 = sbr.rel (0) target = $region21
    $region20: #{tpu_custom_call.1} parent=1 // pred_region
      %127 = dma.done [#allocation3], 128
    $region21: #{tpu_custom_call.1} parent=1 // pred_fallthru
      _
    %128 = vsyncpa [#allocation3], 1

</llo_original>
